<compile_context>
chip_gen: v7x
topology: tpu7x:2x2x1
jax: 0.10.0
libtpu: 0.0.40
codegen_flags: <defaults>
</compile_context>

<pallas_src>
import jax
import jax.numpy as jnp
from jax.experimental import pallas as pl
from jax.experimental.pallas import tpu as pltpu

_LANE = 128
_SUB = 8
_MiB = 1 << 20


def _round_up(x, m):
    return -(-x // m) * m


def _tpu_params():
    """Per-generation VMEM budgets (hidden double-buffer), scoped-VMEM cap, #cores."""
    kind = ""
    try:
        kind = jax.devices()[0].device_kind.lower()
    except Exception:
        pass
    if "v7" in kind or "7x" in kind:
        # 64 MiB physical VMEM / TC, 3.2 TB/s HBM, 2 TensorCores per chip.
        return dict(gen=7, hid_budget={"mxu": 20 * _MiB, "vpu": 16 * _MiB},
                    vmem_cap=56 * _MiB, cores=2)
    if "v6" in kind:
        # 128 MiB physical VMEM, ~1.4 TB/s HBM, single TensorCore.
        return dict(gen=6, hid_budget={"mxu": 32 * _MiB, "vpu": 24 * _MiB},
                    vmem_cap=100 * _MiB, cores=1)
    if "v5" in kind:
        # 128 MiB physical VMEM, ~0.82 TB/s HBM, single TensorCore.
        return dict(gen=5, hid_budget={"mxu": 32 * _MiB, "vpu": 24 * _MiB},
                    vmem_cap=100 * _MiB, cores=1)
    # Unknown / older generation: stay conservative.
    return dict(gen=0, hid_budget={"mxu": 12 * _MiB, "vpu": 10 * _MiB},
                vmem_cap=48 * _MiB, cores=1)


def _tile_candidates(n, quantum):
    """Descending tile sizes t with n % t == 0 and (t % quantum == 0 or t == n)."""
    return [t for t in range(n, 0, -1) if n % t == 0 and (t % quantum == 0 or t == n)]


def _choose_tiles(B, S, H, itemsize, ts_quantum, hid_budget, cores):
    # TB: sublane-dense output rows when possible; otherwise full batch (legal
    # full-extent block), never pad the big tensor.
    TB = 8 if B % 8 == 0 else B
    th_cands = _tile_candidates(H, _LANE)       # starts with TH = H
    ts_cands = _tile_candidates(S, ts_quantum)  # starts with TS = S

    def hid_bytes(ts, th):  # double-buffered hidden tile footprint
        return 2 * TB * _round_up(ts, _SUB) * _round_up(th, _LANE) * itemsize

    def best_ts(th):
        for ts in ts_cands:
            if hid_bytes(ts, th) <= hid_budget:
                return ts
        return ts_cands[-1]

    # Prefer full-H tiles (contiguous DMA rows per batch row); shrink TS first.
    TH = th_cands[0]
    TS = best_ts(TH)
    if hid_bytes(TS, TH) > hid_budget:
        for th in th_cands[1:]:
            ts = best_ts(th)
            if hid_bytes(ts, th) <= hid_budget:
                TH, TS = th, ts
                break
        # else: keep the smallest-TS / full-H combo; vmem_limit_bytes absorbs it.

    # v7x: make sure both TensorCores get at least one "parallel" grid tile.
    if cores > 1 and (B // TB) * (H // TH) < cores:
        for th in th_cands:
            if H // th >= cores:
                TH = th
                TS = best_ts(th)
                break
    return TB, TS, TH


def _vmem_need(TB, TS, TH, itemsize, impl):
    ru = _round_up
    hid = 2 * TB * ru(TS, _SUB) * ru(TH, _LANE) * itemsize
    if impl == "mxu":
        msk = 2 * TB * _SUB * ru(TS, _LANE) * itemsize         # (TB, 1, TS)
        outb = 2 * TB * _SUB * ru(TH, _LANE) * 4               # (TB, 1, TH) f32
        acc = TB * _SUB * ru(TH, _LANE) * 4
        inv = 2 * TB * _SUB * _LANE * 4
        tmp = 0
    else:
        msk = 2 * TB * ru(TS, _SUB) * _LANE * 4                # (TB, TS, 1) f32
        outb = 2 * ru(TB, _SUB) * ru(TH, _LANE) * 4            # (TB, TH) f32
        acc = ru(TB, _SUB) * ru(TH, _LANE) * 4
        inv = 2 * ru(TB, _SUB) * _LANE * 4
        # headroom in case Mosaic materializes the f32 product before the reduce
        tmp = TB * ru(TS, _SUB) * ru(TH, _LANE) * 4
    return hid + msk + outb + acc + inv + tmp


# --------------------------------------------------------------------------------------
# Kernels
# --------------------------------------------------------------------------------------
def _mean_pool_mxu_kernel(m_ref, h_ref, inv_ref, o_ref, acc_ref):
    # m_ref:   (TB, 1, TS)  hidden dtype, lane-dense 0/1 mask
    # h_ref:   (TB, TS, TH) hidden dtype, streamed at native precision
    # inv_ref: (TB, 1, 1)   f32, precomputed 1 / clamp(sum(mask), 1e-9)
    # o_ref:   (TB, 1, TH)  f32 output block (resident across the S axis)
    # acc_ref: (TB, 1, TH)  f32 VMEM accumulator
    s = pl.program_id(2)

    @pl.when(s == 0)
    def _():
        acc_ref[...] = jnp.zeros_like(acc_ref)

    # Fused mask-and-sum over this sequence tile on the MXU, f32 accumulation.
    acc_ref[...] += jnp.einsum(
        "bqs,bsh->bqh", m_ref[...], h_ref[...],
        preferred_element_type=jnp.float32)

    @pl.when(s == pl.num_programs(2) - 1)
    def _():
        o_ref[...] = (acc_ref[...] * inv_ref[...]).astype(o_ref.dtype)


def _mean_pool_vpu_kernel(m_ref, h_ref, inv_ref, o_ref, acc_ref):
    # m_ref:   (TB, TS, 1)  f32 0/1 mask (broadcast along lanes)
    # h_ref:   (TB, TS, TH) hidden dtype, streamed at native precision
    # inv_ref: (TB, 1)      f32
    # o_ref:   (TB, TH)     f32 output block (resident across the S axis)
    # acc_ref: (TB, TH)     f32 VMEM accumulator
    s = pl.program_id(2)

    @pl.when(s == 0)
    def _():
        acc_ref[...] = jnp.zeros_like(acc_ref)

    h = h_ref[...].astype(jnp.float32)
    acc_ref[...] += jnp.sum(h * m_ref[...], axis=1)

    @pl.when(s == pl.num_programs(2) - 1)
    def _():
        o_ref[...] = (acc_ref[...] * inv_ref[...]).astype(o_ref.dtype)


# --------------------------------------------------------------------------------------
# Wrapper
# --------------------------------------------------------------------------------------
def mean_pooling(last_hidden_state, attention_mask, impl="auto"):
    """Pallas equivalent of MeanPooling.forward.

    last_hidden_state: [B, S, H]  (any float dtype; streamed as-is)
    attention_mask:    [B, S]     (any numeric/bool dtype, 0/1)
    impl: "auto" | "mxu" | "vpu"
    returns:           [B, H] float32 (matches torch's promote-to-float semantics)
    """
    B, S, H = last_hidden_state.shape
    dtype = last_hidden_state.dtype
    itemsize = jnp.dtype(dtype).itemsize

    params = _tpu_params()
    if impl == "auto":
        # MXU matvec is HBM-bound and known-good on v5e/v6e (and the only bf16-friendly
        # option on v5e's VPU); on v7x prefer the VPU formulation (review feedback).
        impl = "vpu" if params["gen"] == 7 else "mxu"
    assert impl in ("mxu", "vpu")

    ts_quantum = _LANE if impl == "mxu" else _SUB
    TB, TS, TH = _choose_tiles(B, S, H, itemsize, ts_quantum,
                               params["hid_budget"][impl], params["cores"])
    grid = (B // TB, H // TH, S // TS)

    # Per-row reciprocal of the clamped mask count (B scalars, computed by XLA).
    mask_f32 = attention_mask.astype(jnp.float32)
    inv = 1.0 / jnp.maximum(jnp.sum(mask_f32, axis=1, keepdims=True), 1e-9)  # [B, 1]

    vmem_need = _vmem_need(TB, TS, TH, itemsize, impl)
    vmem_limit = int(min(params["vmem_cap"],
                         max(32 * _MiB, int(vmem_need * 1.25) + 2 * _MiB)))

    hid_spec = pl.BlockSpec((TB, TS, TH), lambda b, h, s: (b, s, h))
    compiler_params = pltpu.CompilerParams(
        dimension_semantics=("parallel", "parallel", "arbitrary"),
        vmem_limit_bytes=vmem_limit)
    cost = pl.CostEstimate(
        flops=2 * B * S * H,
        transcendentals=0,
        bytes_accessed=B * S * H * itemsize + B * S * 4 + B * H * 4 + B * 4)

    if impl == "mxu":
        mask_in = attention_mask.astype(dtype).reshape(B, 1, S)  # lane-dense along S
        inv_in = inv.reshape(B, 1, 1)
        out = pl.pallas_call(
            _mean_pool_mxu_kernel,
            out_shape=jax.ShapeDtypeStruct((B, 1, H), jnp.float32),
            grid_spec=pltpu.PrefetchScalarGridSpec(
                num_scalar_prefetch=0,
                grid=grid,
                in_specs=[
                    pl.BlockSpec((TB, 1, TS), lambda b, h, s: (b, 0, s)),
                    hid_spec,
                    pl.BlockSpec((TB, 1, 1), lambda b, h, s: (b, 0, 0)),
                ],
                out_specs=pl.BlockSpec((TB, 1, TH), lambda b, h, s: (b, 0, h)),
                scratch_shapes=[pltpu.VMEM((TB, 1, TH), jnp.float32)]),
            compiler_params=compiler_params,
            cost_estimate=cost,
        )(mask_in, last_hidden_state, inv_in)
        return out.reshape(B, H)

    # "vpu" path: masked multiply + sublane reduction.
    mask_in = mask_f32.reshape(B, S, 1)
    out = pl.pallas_call(
        _mean_pool_vpu_kernel,
        out_shape=jax.ShapeDtypeStruct((B, H), jnp.float32),
        grid_spec=pltpu.PrefetchScalarGridSpec(
            num_scalar_prefetch=0,
            grid=grid,
            in_specs=[
                pl.BlockSpec((TB, TS, 1), lambda b, h, s: (b, s, 0)),
                hid_spec,
                pl.BlockSpec((TB, 1), lambda b, h, s: (b, 0)),
            ],
            out_specs=pl.BlockSpec((TB, TH), lambda b, h, s: (b, h)),
            scratch_shapes=[pltpu.VMEM((TB, TH), jnp.float32)]),
        compiler_params=compiler_params,
        cost_estimate=cost,
    )(mask_in, last_hidden_state, inv)
    return out


if __name__ == "__main__":
    key = jax.random.PRNGKey(0)

    B, S, H = 2, 8, 32
    last_hidden_state = jax.random.normal(key, (B, S, H), dtype=jnp.float32)
    # Binary attention mask (padding at the tail of sequence 1).
    attention_mask = jnp.array([[1] * S, [1] * (S - 3) + [0] * 3], dtype=jnp.int32)

    m = attention_mask.astype(jnp.float32)[..., None]
    ref = (last_hidden_state * m).sum(1) / jnp.maximum(m.sum(1), 1e-9)

    # float32 input: exercise auto dispatch plus both explicit formulations.
    for impl in ("auto", "mxu", "vpu"):
        out = jax.block_until_ready(mean_pooling(last_hidden_state, attention_mask,
                                                 impl=impl))
        assert out.shape == (B, H), (impl, out.shape)
        assert out.dtype == jnp.float32, (impl, out.dtype)
        assert jnp.allclose(out, ref, atol=1e-2, rtol=1e-2), impl

    # bf16 streaming path (native dtype in HBM, f32 accumulation in-kernel).
    h_bf16 = last_hidden_state.astype(jnp.bfloat16)
    ref_bf = (h_bf16.astype(jnp.float32) * m).sum(1) / jnp.maximum(m.sum(1), 1e-9)
    out_bf = jax.block_until_ready(mean_pooling(h_bf16, attention_mask))
    assert out_bf.shape == (B, H)
    assert out_bf.dtype == jnp.float32
    assert jnp.allclose(out_bf, ref_bf, atol=1e-2, rtol=1e-2)

    print("KERNEL_OK")
</pallas_src>

<mosaic_0001>
module attributes {stable_mosaic.version = 11 : i64} {
  func.func @_mean_pool_mxu_kernel(%arg0: i32, %arg1: i32, %arg2: i32, %arg3: memref<2x1x8xf32, #tpu.memory_space<vmem>>, %arg4: memref<2x8x32xf32, #tpu.memory_space<vmem>>, %arg5: memref<2x1x1xf32, #tpu.memory_space<vmem>>, %arg6: memref<2x1x32xf32, #tpu.memory_space<vmem>>, %arg7: memref<2x1x32xf32, #tpu.memory_space<vmem>>) attributes {dimension_semantics = [#tpu.dimension_semantics<parallel>, #tpu.dimension_semantics<parallel>, #tpu.dimension_semantics<arbitrary>], iteration_bounds = array<i64: 1, 1, 1>, scalar_prefetch = 0 : i64, scratch_operands = 1 : i64, tpu.core_type = #tpu.core_type<tc>, window_params = [{transform_indices = @transform_0, window_bounds = array<i64: 2, 1, 8>}, {transform_indices = @transform_1, window_bounds = array<i64: 2, 8, 32>}, {transform_indices = @transform_2, window_bounds = array<i64: 2, 1, 1>}, {transform_indices = @transform_3, window_bounds = array<i64: 2, 1, 32>}]} {
    %c0_i32 = arith.constant 0 : i32
    %0 = arith.cmpi eq, %arg2, %c0_i32 : i32
    %1 = arith.extui %0 : i1 to i32
    %c0_i32_0 = arith.constant 0 : i32
    %2 = arith.cmpi ne, %1, %c0_i32_0 : i32
    scf.if %2 {
      %cst_14 = arith.constant 0.000000e+00 : f32
      %12 = vector.broadcast %cst_14 : f32 to vector<2x1x32xf32>
      %c0_15 = arith.constant 0 : index
      %c0_16 = arith.constant 0 : index
      %c0_17 = arith.constant 0 : index
      %13 = vector.load %arg7[%c0_15, %c0_16, %c0_17] : memref<2x1x32xf32, #tpu.memory_space<vmem>>, vector<2x1x32xf32>
      tpu.vector_store %arg7[%c0_15, %c0_16, %c0_17], %12 {strides = array<i32>} : memref<2x1x32xf32, #tpu.memory_space<vmem>>, vector<2x1x32xf32>,
    } else {
    }
    %c0 = arith.constant 0 : index
    %c0_1 = arith.constant 0 : index
    %c0_2 = arith.constant 0 : index
    %3 = vector.load %arg7[%c0, %c0_1, %c0_2] : memref<2x1x32xf32, #tpu.memory_space<vmem>>, vector<2x1x32xf32>
    %c0_3 = arith.constant 0 : index
    %c0_4 = arith.constant 0 : index
    %c0_5 = arith.constant 0 : index
    %4 = vector.load %arg3[%c0_3, %c0_4, %c0_5] : memref<2x1x8xf32, #tpu.memory_space<vmem>>, vector<2x1x8xf32>
    %c0_6 = arith.constant 0 : index
    %c0_7 = arith.constant 0 : index
    %c0_8 = arith.constant 0 : index
    %5 = vector.load %arg4[%c0_6, %c0_7, %c0_8] : memref<2x8x32xf32, #tpu.memory_space<vmem>>, vector<2x8x32xf32>
    "tpu.trace_start"() <{level = 10 : i32, message = "bqs,bsh->bqh"}> : () -> ()
    %cst = arith.constant dense<0.000000e+00> : vector<2x1x32xf32>
    %6 = tpu.matmul %4, %5, %cst {dimension_numbers = #tpu.dot_dimension_numbers<[2], [1], [1], [2], [0, 0, 0, 1, 1, 2], [0], [0]>} : vector<2x1x8xf32>, vector<2x8x32xf32>, vector<2x1x32xf32> -> vector<2x1x32xf32>
    "tpu.trace_stop"() : () -> ()
    %7 = arith.addf %3, %6 : vector<2x1x32xf32>
    %c0_9 = arith.constant 0 : index
    %c0_10 = arith.constant 0 : index
    %c0_11 = arith.constant 0 : index
    %8 = vector.load %arg7[%c0_9, %c0_10, %c0_11] : memref<2x1x32xf32, #tpu.memory_space<vmem>>, vector<2x1x32xf32>
    tpu.vector_store %arg7[%c0_9, %c0_10, %c0_11], %7 {strides = array<i32>} : memref<2x1x32xf32, #tpu.memory_space<vmem>>, vector<2x1x32xf32>,
    %c0_i32_12 = arith.constant 0 : i32
    %9 = arith.cmpi eq, %arg2, %c0_i32_12 : i32
    %10 = arith.extui %9 : i1 to i32
    %c0_i32_13 = arith.constant 0 : i32
    %11 = arith.cmpi ne, %10, %c0_i32_13 : i32
    scf.if %11 {
      %c0_14 = arith.constant 0 : index
      %c0_15 = arith.constant 0 : index
      %c0_16 = arith.constant 0 : index
      %12 = vector.load %arg7[%c0_14, %c0_15, %c0_16] : memref<2x1x32xf32, #tpu.memory_space<vmem>>, vector<2x1x32xf32>
      %c0_17 = arith.constant 0 : index
      %c0_18 = arith.constant 0 : index
      %c0_19 = arith.constant 0 : index
      %13 = vector.load %arg5[%c0_17, %c0_18, %c0_19] : memref<2x1x1xf32, #tpu.memory_space<vmem>>, vector<2x1x1xf32>
      %14 = vector.broadcast %13 : vector<2x1x1xf32> to vector<2x1x32xf32>
      %15 = arith.mulf %12, %14 : vector<2x1x32xf32>
      %c0_20 = arith.constant 0 : index
      %c0_21 = arith.constant 0 : index
      %c0_22 = arith.constant 0 : index
      %16 = vector.load %arg6[%c0_20, %c0_21, %c0_22] : memref<2x1x32xf32, #tpu.memory_space<vmem>>, vector<2x1x32xf32>
      tpu.vector_store %arg6[%c0_20, %c0_21, %c0_22], %15 {strides = array<i32>} : memref<2x1x32xf32, #tpu.memory_space<vmem>>, vector<2x1x32xf32>,
    } else {
    }
    return
  }
  func.func @transform_0(%arg0: i32, %arg1: i32, %arg2: i32) -> (i32, i32, i32) {
    %c0_i32 = arith.constant 0 : i32
    %c0_i32_0 = arith.constant 0 : i32
    return %arg0, %c0_i32, %arg2 : i32, i32, i32
  }
  func.func @transform_1(%arg0: i32, %arg1: i32, %arg2: i32) -> (i32, i32, i32) {
    %c0_i32 = arith.constant 0 : i32
    return %arg0, %arg2, %arg1 : i32, i32, i32
  }
  func.func @transform_2(%arg0: i32, %arg1: i32, %arg2: i32) -> (i32, i32, i32) {
    %c0_i32 = arith.constant 0 : i32
    %c0_i32_0 = arith.constant 0 : i32
    %c0_i32_1 = arith.constant 0 : i32
    return %arg0, %c0_i32, %c0_i32_0 : i32, i32, i32
  }
  func.func @transform_3(%arg0: i32, %arg1: i32, %arg2: i32) -> (i32, i32, i32) {
    %c0_i32 = arith.constant 0 : i32
    %c0_i32_0 = arith.constant 0 : i32
    return %arg0, %c0_i32, %arg1 : i32, i32, i32
  }
}

</mosaic_0001>

<llo_original>
// kernel: tpu_custom_call.1
$region0: #{tpu_custom_call.1}
  #allocation0 [shape = 'u32[]', space=smem, size = 0x4, offset = 0x4, fixed_abs, tag = 'smem constant byte address 0x4 - core index']
  #allocation1 [shape = 'u32[144,128]{1,0:T(1,128)}', space=vmem, size = 0x12000, scoped, tag = 'internal scratch']
  #allocation2 [shape = 'f32[2,1,32]{2,1,0:T(1,128)}', space=vmem, size = 0x400, scoped, tag = 'scratch operand']
  %s0 = inlined_call_operand.vmem [shape: f32[2,1,8], index: 0, kind: input, shape index: {}]
  %s1 = inlined_call_operand.hbm [shape: f32[2,8,32], index: 1, kind: input, shape index: {}]
  %s2 = inlined_call_operand.vmem [shape: f32[2,1,1], index: 2, kind: input, shape index: {}]
  %s3 = inlined_call_operand.hbm [shape: f32[2,1,32], index: 3, kind: output, shape index: {}]
  %s4 = sld [smem:[#allocation0]]
  $region34: #{tpu_custom_call.1} parent=0
    _
  %s6 = ssub.s32 1, %s4
  %s7 = scalar_select 0, %s6, %s4
  $region1: #{tpu_custom_call.1} parent=0
    #allocation3 [shape = 'u8[8192]{0}', space=vmem, size = 0x2000, scoped, tag = 'input window, operand 1, single buffered']
    #allocation4 [shape = 's32[1]{0}', space=sflag, size = 0x4, scoped, tag = 'scoped memory for tpu_custom_call.1']
    #allocation5 [shape = 's32[1]{0}', space=sflag, size = 0x4, scoped, tag = 'scoped memory for tpu_custom_call.1']
    #allocation6 [shape = 'u8[1024]{0}', space=vmem, size = 0x400, scoped, tag = 'output window, operand 0, single buffered']
    %8 = vsyncpa [#allocation4], 0
    %9 = vsyncpa [#allocation5], 0
    // Predicated region
    $region2: #{tpu_custom_call.1} parent=1 // pred_check
      _
    $region3: #{tpu_custom_call.1} parent=1 // pred_check_branch
      %11 = sbr.rel (0) target = $region5
    $region4: #{tpu_custom_call.1} parent=1 // pred_region
      _
    $region5: #{tpu_custom_call.1} parent=1 // pred_fallthru
      _
    // Predicated region
    $region6: #{tpu_custom_call.1} parent=1 // pred_check
      _
    $region7: #{tpu_custom_call.1} parent=1 // pred_check_branch
      %13 = sbr.rel (0) target = $region9
    $region8: #{tpu_custom_call.1} parent=1 // pred_region
      %s15 = ssub.s32 256, 256
      %16 = vsyncadd [#allocation4], %s15
      %s17 = sshll.u32 [#allocation3], 4
      %s18 = int_to_ptr.vmem [resolvable:$true] %s17
      %23 = dma.hbm_to_vmem [thread:$0]  %s1, 256, %s18, [#allocation4], 128, 128, 8
    $region9: #{tpu_custom_call.1} parent=1 // pred_fallthru
      _
    // Predicated region
    $region10: #{tpu_custom_call.1} parent=1 // pred_check
      _
    $region11: #{tpu_custom_call.1} parent=1 // pred_check_branch
      %25 = sbr.rel (0) target = $region13
    $region12: #{tpu_custom_call.1} parent=1 // pred_region
      _
    $region13: #{tpu_custom_call.1} parent=1 // pred_fallthru
      _
    // Predicated region
    $region14: #{tpu_custom_call.1} parent=1 // pred_check
      _
    $region15: #{tpu_custom_call.1} parent=1 // pred_check_branch
      %27 = sbr.rel (0) target = $region17
    $region16: #{tpu_custom_call.1} parent=1 // pred_region
      %28 = dma.done [#allocation4], 256
    $region17: #{tpu_custom_call.1} parent=1 // pred_fallthru
      _
    %p29 = scmp.eq.s32.totalorder 0, 0
    // Predicated region
    $region18: #{tpu_custom_call.1} parent=1 // pred_check
      %p30 = pneg %p29
    $region19: #{tpu_custom_call.1} parent=1 // pred_check_branch
      %32 = sbr.rel (%p30) target = $region21
    $region20: #{tpu_custom_call.1} parent=1 // pred_region
      %vm33 = vcmask 253952
      %34 = vst.msk [vmem:[#allocation2] sm:$0x1] %vm33, 0.0
      %35 = vst.msk [vmem:[#allocation2 + $0x1] sm:$0x1] %vm33, 0.0
    $region21: #{tpu_custom_call.1} parent=1 // pred_fallthru
      _
    %v36 = vld [vmem:[#allocation2] sm:$0x1]
    %v37 = vld [vmem:[#allocation2 + $0x1] sm:$0x1]
    %v38 = vld [vmem:[%s0] sm:$0x1]
    %v39 = vld [vmem:[%s0 + $0x1] sm:$0x1]
    %v40 = vld [vmem:[#allocation3] sm:$0xff]
    %v41 = vld [vmem:[#allocation3 + $0x8] sm:$0xff]
    %vm42 = vcmask 64512
    %v44 = vsel %vm42, %v38, 0
    %46 = vmatprep.subr.mxu0 0.0
    %47 = vmatpush1.msra.mxu0 %v40
    %48 = vmatprep.subr.mxu0 0.0
    %49 = vmatpush1.msra.mxu0 0.0
    %50 = vmatprep.subr.mxu0 0.0
    %51 = vmatpush1.msra.mxu0 0.0
    %52 = vmatprep.subr.mxu0 0.0
    %53 = vmatpush1.msra.mxu0 0.0
    %54 = vmatprep.subr.mxu0 0.0
    %55 = vmatpush1.msra.mxu0 0.0
    %56 = vmatprep.subr.mxu0 0.0
    %57 = vmatpush1.msra.mxu0 0.0
    %58 = vmatprep.subr.mxu0 0.0
    %59 = vmatpush1.msra.mxu0 0.0
    %60 = vmatprep.subr.mxu0 0.0
    %61 = vmatpush1.msra.mxu0 0.0
    %62 = vmatprep.subr.mxu0 0.0
    %63 = vmatpush1.msra.mxu0 0.0
    %64 = vmatprep.subr.mxu0 0.0
    %65 = vmatpush1.msra.mxu0 0.0
    %66 = vmatprep.subr.mxu0 0.0
    %67 = vmatpush1.msra.mxu0 0.0
    %68 = vmatprep.subr.mxu0 0.0
    %69 = vmatpush1.msra.mxu0 0.0
    %70 = vmatprep.subr.mxu0 0.0
    %71 = vmatpush1.msra.mxu0 0.0
    %72 = vmatprep.subr.mxu0 0.0
    %73 = vmatpush1.msra.mxu0 0.0
    %74 = vmatprep.subr.mxu0 0.0
    %75 = vmatpush1.msra.mxu0 0.0
    %76 = vmatprep.subr.mxu0 0.0
    %77 = vmatpush1.msra.mxu0 0.0
    %78 = vmatprep.subr.mxu0 0.0
    %79 = vmatpush1.msra.mxu0 0.0
    %80 = vmatprep.subr.mxu0 0.0
    %81 = vmatpush1.msra.mxu0 0.0
    %82 = vmatprep.subr.mxu0 0.0
    %83 = vmatpush1.msra.mxu0 0.0
    %84 = vmatprep.subr.mxu0 0.0
    %85 = vmatpush1.msra.mxu0 0.0
    %86 = vmatprep.subr.mxu0 0.0
    %87 = vmatpush1.msra.mxu0 0.0
    %88 = vmatprep.subr.mxu0 0.0
    %89 = vmatpush1.msra.mxu0 0.0
    %90 = vmatprep.subr.mxu0 0.0
    %91 = vmatpush1.msra.mxu0 0.0
    %92 = vmatprep.subr.mxu0 0.0
    %93 = vmatpush1.msra.mxu0 0.0
    %94 = vmatprep.subr.mxu0 0.0
    %95 = vmatpush1.msra.mxu0 0.0
    %96 = vmatprep.subr.mxu0 0.0
    %97 = vmatpush1.msra.mxu0 0.0
    %98 = vmatprep.subr.mxu0 0.0
    %99 = vmatpush1.msra.mxu0 0.0
    %100 = vmatprep.subr.mxu0 0.0
    %101 = vmatpush1.msra.mxu0 0.0
    %102 = vmatprep.subr.mxu0 0.0
    %103 = vmatpush1.msra.mxu0 0.0
    %104 = vmatprep.subr.mxu0 0.0
    %105 = vmatpush1.msra.mxu0 0.0
    %106 = vmatprep.subr.mxu0 0.0
    %107 = vmatpush1.msra.mxu0 0.0
    %108 = vmatprep.subr.mxu0 0.0
    %109 = vmatpush1.msra.mxu0 0.0
    %110 = vmatprep.mubr.f32.mxu0 0.0
    %111 = vmatmul.mubr.f32.gmra.mrb[0].mxu0 %v44
    %v112 = vpop.f32.mrb[0].mxu0
    %v113 = vadd.f32 0.0, %v112
    %v114 = vpop.f32.mrb[0].mxu0
    %115 = vdwg.mxu0
    %v117 = vsel %vm42, %v39, 0
    %119 = vmatprep.subr.mxu0 0.0
    %120 = vmatpush1.msra.mxu0 %v41
    %121 = vmatprep.subr.mxu0 0.0
    %122 = vmatpush1.msra.mxu0 0.0
    %123 = vmatprep.subr.mxu0 0.0
    %124 = vmatpush1.msra.mxu0 0.0
    %125 = vmatprep.subr.mxu0 0.0
    %126 = vmatpush1.msra.mxu0 0.0
    %127 = vmatprep.subr.mxu0 0.0
    %128 = vmatpush1.msra.mxu0 0.0
    %129 = vmatprep.subr.mxu0 0.0
    %130 = vmatpush1.msra.mxu0 0.0
    %131 = vmatprep.subr.mxu0 0.0
    %132 = vmatpush1.msra.mxu0 0.0
    %133 = vmatprep.subr.mxu0 0.0
    %134 = vmatpush1.msra.mxu0 0.0
    %135 = vmatprep.subr.mxu0 0.0
    %136 = vmatpush1.msra.mxu0 0.0
    %137 = vmatprep.subr.mxu0 0.0
    %138 = vmatpush1.msra.mxu0 0.0
    %139 = vmatprep.subr.mxu0 0.0
    %140 = vmatpush1.msra.mxu0 0.0
    %141 = vmatprep.subr.mxu0 0.0
    %142 = vmatpush1.msra.mxu0 0.0
    %143 = vmatprep.subr.mxu0 0.0
    %144 = vmatpush1.msra.mxu0 0.0
    %145 = vmatprep.subr.mxu0 0.0
    %146 = vmatpush1.msra.mxu0 0.0
    %147 = vmatprep.subr.mxu0 0.0
    %148 = vmatpush1.msra.mxu0 0.0
    %149 = vmatprep.subr.mxu0 0.0
    %150 = vmatpush1.msra.mxu0 0.0
    %151 = vmatprep.subr.mxu0 0.0
    %152 = vmatpush1.msra.mxu0 0.0
    %153 = vmatprep.subr.mxu0 0.0
    %154 = vmatpush1.msra.mxu0 0.0
    %155 = vmatprep.subr.mxu0 0.0
    %156 = vmatpush1.msra.mxu0 0.0
    %157 = vmatprep.subr.mxu0 0.0
    %158 = vmatpush1.msra.mxu0 0.0
    %159 = vmatprep.subr.mxu0 0.0
    %160 = vmatpush1.msra.mxu0 0.0
    %161 = vmatprep.subr.mxu0 0.0
    %162 = vmatpush1.msra.mxu0 0.0
    %163 = vmatprep.subr.mxu0 0.0
    %164 = vmatpush1.msra.mxu0 0.0
    %165 = vmatprep.subr.mxu0 0.0
    %166 = vmatpush1.msra.mxu0 0.0
    %167 = vmatprep.subr.mxu0 0.0
    %168 = vmatpush1.msra.mxu0 0.0
    %169 = vmatprep.subr.mxu0 0.0
    %170 = vmatpush1.msra.mxu0 0.0
    %171 = vmatprep.subr.mxu0 0.0
    %172 = vmatpush1.msra.mxu0 0.0
    %173 = vmatprep.subr.mxu0 0.0
    %174 = vmatpush1.msra.mxu0 0.0
    %175 = vmatprep.subr.mxu0 0.0
    %176 = vmatpush1.msra.mxu0 0.0
    %177 = vmatprep.subr.mxu0 0.0
    %178 = vmatpush1.msra.mxu0 0.0
    %179 = vmatprep.subr.mxu0 0.0
    %180 = vmatpush1.msra.mxu0 0.0
    %181 = vmatprep.subr.mxu0 0.0
    %182 = vmatpush1.msra.mxu0 0.0
    %183 = vmatprep.mubr.f32.mxu0 0.0
    %184 = vmatmul.mubr.f32.gmra.mrb[0].mxu0 %v117
    %v185 = vpop.f32.mrb[0].mxu0
    %v186 = vadd.f32 0.0, %v185
    %v187 = vpop.f32.mrb[0].mxu0
    %188 = vdwg.mxu0
    %v189 = vadd.f32 %v36, %v113
    %v190 = vadd.f32 %v37, %v186
    %vm191 = vcmask 253952
    %192 = vst.msk [vmem:[#allocation2] sm:$0x1] %vm191, %v189
    %193 = vst.msk [vmem:[#allocation2 + $0x1] sm:$0x1] %vm191, %v190
    // Predicated region
    $region22: #{tpu_custom_call.1} parent=1 // pred_check
      %p194 = pneg %p29
    $region23: #{tpu_custom_call.1} parent=1 // pred_check_branch
      %196 = sbr.rel (%p194) target = $region25
    $region24: #{tpu_custom_call.1} parent=1 // pred_region
      %v197 = vld [vmem:[#allocation2] sm:$0x1]
      %v198 = vld [vmem:[#allocation2 + $0x1] sm:$0x1]
      %v199 = vld [vmem:[%s2] sm:$0x1]
      %v200 = vld [vmem:[%s2 + $0x1] sm:$0x1]
      %202 = vset.pattern.permute.xlu0 0
      %203 = vperm.xlu0 %202, %v199
      %v204 = vpop.permute.xlu0 %203
      %v206 = vlaneseq
      %v207 = vshrl.u32 %v206, 7
      %v208 = vsub.s32 0, %v207
      %v209 = vrot.slane %v204, %v208
      %211 = vset.pattern.permute.xlu0 0
      %212 = vperm.xlu0 %211, %v200
      %v213 = vpop.permute.xlu0 %212
      %v215 = vlaneseq
      %v216 = vshrl.u32 %v215, 7
      %v217 = vsub.s32 0, %v216
      %v218 = vrot.slane %v213, %v217
      %v219 = vmul.f32 %v197, %v209
      %v220 = vmul.f32 %v198, %v218
      %221 = vst.msk [vmem:[#allocation6] sm:$0x1] %vm191, %v219
      %222 = vst.msk [vmem:[#allocation6 + $0x1] sm:$0x1] %vm191, %v220
    $region25: #{tpu_custom_call.1} parent=1 // pred_fallthru
      _
    // Predicated region
    $region26: #{tpu_custom_call.1} parent=1 // pred_check
      _
    $region27: #{tpu_custom_call.1} parent=1 // pred_check_branch
      %224 = sbr.rel (0) target = $region29
    $region28: #{tpu_custom_call.1} parent=1 // pred_region
      %s226 = ssub.s32 32, 32
      %227 = vsyncadd [#allocation5], %s226
      %s228 = sshll.u32 [#allocation6], 4
      %s229 = int_to_ptr.vmem [resolvable:$true] %s228
      %234 = dma.vmem_to_hbm [thread:$0]  %s229, 32, %s3, [#allocation5], 16, 16, 1
    $region29: #{tpu_custom_call.1} parent=1 // pred_fallthru
      _
    // Predicated region
    $region30: #{tpu_custom_call.1} parent=1 // pred_check
      _
    $region31: #{tpu_custom_call.1} parent=1 // pred_check_branch
      %236 = sbr.rel (0) target = $region33
    $region32: #{tpu_custom_call.1} parent=1 // pred_region
      %237 = dma.done [#allocation5], 32
    $region33: #{tpu_custom_call.1} parent=1 // pred_fallthru
      _
    %238 = vsyncpa [#allocation4], 1
    %239 = vsyncpa [#allocation5], 1

</llo_original>
